<compile_context>
chip_gen: v5e
topology: v5e:2x2
jax: 0.10.0
libtpu: 0.0.40
codegen_flags: <defaults>
</compile_context>

<pallas_src>
import functools

import jax
import jax.numpy as jnp
from jax import lax
from jax.experimental import pallas as pl
from jax.experimental.pallas import tpu as pltpu


def _round_up(v, m):
    return (v + m - 1) // m * m


def _sparse_mha_kernel(qid_ref, kid_ref, x_ref,
                       wq_ref, bq_ref, wk_ref, bk_ref, wv_ref, bv_ref,
                       wx_ref, bx_ref,
                       o_ref,
                       q_s, k_s, v_s, num_s, d_s, m_s,
                       *, n_head):
    f32 = jnp.float32
    s_dim, c_dim = q_s.shape
    te = qid_ref.shape[0]
    cc = c_dim // n_head
    scale = 1.0 / (cc ** 0.5)

    e_idx = pl.program_id(1)
    n_e = pl.num_programs(1)

    @pl.when(e_idx == 0)
    def _init():
        # projections computed once per batch and cached in VMEM scratch
        xb = x_ref[0]                                                        # (S, C)
        q_s[...] = jnp.dot(xb, wq_ref[...], preferred_element_type=f32) + bq_ref[...]
        k_s[...] = jnp.dot(xb, wk_ref[...], preferred_element_type=f32) + bk_ref[...]
        v_s[...] = jnp.dot(xb, wv_ref[...], preferred_element_type=f32) + bv_ref[...]
        num_s[...] = jnp.zeros_like(num_s)
        d_s[...] = jnp.zeros_like(d_s)
        m_s[...] = jnp.full(m_s.shape, -1e30, dtype=f32)

    # --- gather/scatter one-hots built in-kernel (no O(E*S) HBM arrays) ---------
    col = lax.broadcasted_iota(jnp.int32, (te, s_dim), 1)
    oh_q = (qid_ref[...] == col).astype(f32)                                 # (TE, S)
    oh_k = (kid_ref[...] == col).astype(f32)                                 # (TE, S)
    # padded edges carry sentinel index == S -> all-zero rows -> contribute nothing

    qg = jnp.dot(oh_q, q_s[...], preferred_element_type=f32)                 # q[q_id]
    kg = jnp.dot(oh_k, k_s[...], preferred_element_type=f32)                 # k[k_id]
    vg = jnp.dot(oh_k, v_s[...], preferred_element_type=f32)                 # v[k_id]

    # --- per-head dot product, reduce+broadcast fused via block-diag mask -------
    row_i = lax.broadcasted_iota(jnp.int32, (c_dim, c_dim), 0)
    col_i = lax.broadcasted_iota(jnp.int32, (c_dim, c_dim), 1)

    def _head_id(idx):  # idx // cc without integer division
        h = jnp.zeros_like(idx)
        for t in range(1, n_head):
            h = h + (idx >= t * cc).astype(jnp.int32)
        return h

    bd = (_head_id(row_i) == _head_id(col_i)).astype(f32)                    # (C, C)
    # qk_bc[e, c] == qk[e, head(c)]  (already broadcast across the head's channels)
    qk_bc = jnp.dot(qg * kg, bd, preferred_element_type=f32) * scale         # (TE, C)

    # --- online (running, per-batch) max: cancels inside each q_id group --------
    m_old = m_s[...]                                                         # (1, 1)
    m_new = jnp.maximum(m_old, jnp.max(qk_bc, keepdims=True))                # (1, 1)
    alpha = jnp.exp(m_old - m_new)                                           # (1, 1)
    eqk = jnp.exp(qk_bc - m_new)                                             # (TE, C)
    # TODO(synk): attention dropout omitted (rate 0.0 / eval mode -> identity)

    tn = (((0,), (0,)), ((), ()))   # contract the edge axis: (oh_q)^T @ rhs
    num_s[...] = alpha * num_s[...] + lax.dot_general(
        oh_q, eqk * vg, tn, preferred_element_type=f32)                      # (S, C)
    d_s[...] = alpha * d_s[...] + lax.dot_general(
        oh_q, eqk, tn, preferred_element_type=f32)                           # (S, C)
    m_s[...] = m_new

    @pl.when(e_idx == n_e - 1)
    def _finalize():
        attn = num_s[...] * pl.reciprocal(d_s[...], approx=False)            # (S, C)
        out = jnp.dot(attn, wx_ref[...], preferred_element_type=f32) + bx_ref[...]
        # TODO(synk): residual dropout omitted (rate 0.0 / eval mode -> identity)
        o_ref[0] = out


def sparse_multihead_attention_forward(x, params, q_id, k_id, n_head, *, edge_block=256):
    """x: (S, B, C) float32.  params: (wq, bq, wk, bk, wv, bv, wx, bx), PyTorch-style
    Linear params (weight (out, in), bias (out,)).  q_id/k_id: int edge indices (E,)."""
    s, b, c = x.shape
    wq, bq, wk, bk, wv, bv, wx, bx = params
    e = int(q_id.shape[0])

    # edge-block size: multiple of 8, no larger than needed
    te = _round_up(max(8, min(edge_block, _round_up(e, 8))), 8)
    e_pad = _round_up(e, te)
    n_eb = e_pad // te

    # pad with out-of-range sentinel == s -> all-zero one-hot rows in the kernel
    qid = jnp.pad(q_id.astype(jnp.int32), (0, e_pad - e), constant_values=s).reshape(e_pad, 1)
    kid = jnp.pad(k_id.astype(jnp.int32), (0, e_pad - e), constant_values=s).reshape(e_pad, 1)

    xb = jnp.transpose(x, (1, 0, 2))  # (B, S, C): lane-dense per-batch slabs

    args = (qid, kid, xb,
            wq.T, bq.reshape(1, c), wk.T, bk.reshape(1, c),
            wv.T, bv.reshape(1, c), wx.T, bx.reshape(1, c))

    id_spec = pl.BlockSpec((te, 1), lambda bi, ei: (ei, 0))
    x_spec = pl.BlockSpec((1, s, c), lambda bi, ei: (bi, 0, 0))
    w_spec = pl.BlockSpec((c, c), lambda bi, ei: (0, 0))
    bias_spec = pl.BlockSpec((1, c), lambda bi, ei: (0, 0))
    in_specs = [id_spec, id_spec, x_spec,
                w_spec, bias_spec, w_spec, bias_spec,
                w_spec, bias_spec, w_spec, bias_spec]
    out_spec = pl.BlockSpec((1, s, c), lambda bi, ei: (bi, 0, 0))

    # rough VMEM budget: double-buffered input blocks + scratch + resident output block
    block_bytes = 4 * (2 * te + s * c + 4 * c * c + 4 * c)       # one set of input blocks
    scratch_bytes = 4 * (5 * s * c + 1)
    out_bytes = 4 * s * c
    need = 2 * block_bytes + scratch_bytes + out_bytes
    vmem_limit = int(min(48 * 2 ** 20, max(4 * need, 16 * 2 ** 20)))

    flops = (2 * b * 4 * s * c * c                                   # 4 projections/x_linear
             + 2 * b * e_pad * (3 * s * c + c * c + 2 * s * c))      # gathers, head mask, scatters
    cost = pl.CostEstimate(flops=flops,
                           transcendentals=b * e_pad * c,
                           bytes_accessed=4 * (2 * b * s * c + 4 * c * c + 4 * c + 2 * e_pad))

    kernel = functools.partial(_sparse_mha_kernel, n_head=n_head)
    out_bsc = pl.pallas_call(
        kernel,
        out_shape=jax.ShapeDtypeStruct((b, s, c), jnp.float32),
        grid_spec=pltpu.PrefetchScalarGridSpec(
            num_scalar_prefetch=0,
            grid=(b, n_eb),
            in_specs=in_specs,
            out_specs=out_spec,
            scratch_shapes=[pltpu.VMEM((s, c), jnp.float32)] * 5      # q, k, v, num, d
                           + [pltpu.VMEM((1, 1), jnp.float32)],       # running max
        ),
        compiler_params=pltpu.CompilerParams(
            dimension_semantics=("parallel", "arbitrary"),
            vmem_limit_bytes=vmem_limit),
        cost_estimate=cost,
    )(*args)
    return jnp.transpose(out_bsc, (1, 0, 2))  # back to (S, B, C)


def ref_forward(x, params, q_id, k_id, n_head):
    """Pure-JAX transcription of the PyTorch forward (eval mode)."""
    wq, bq, wk, bk, wv, bv, wx, bx = params
    s, b, c = x.shape
    cc = c // n_head
    q = x @ wq.T + bq
    k = x @ wk.T + bk
    v = x @ wv.T + bv
    qh = q.reshape(s, b, n_head, cc)
    kh = k.reshape(s, b, n_head, cc)
    vh = v.reshape(s, b, n_head, cc)
    qk = jnp.einsum('sbhc,sbhc->sbh', qh[q_id], kh[k_id])[..., None] / cc ** 0.5
    max_qk = jnp.max(qk)
    eqk = jnp.exp(qk - max_qk)
    d = jnp.zeros((s, b, n_head, 1), jnp.float32).at[q_id].add(eqk)
    qkv = eqk * vh[k_id]
    xo = jnp.zeros((s, b, n_head, cc), jnp.float32).at[q_id].add(qkv)
    xo = (xo / d).reshape(s, b, c)
    return xo @ wx.T + bx


if __name__ == "__main__":
    S, B, C, H = 8, 2, 32, 4

    # sparsity pattern: lower-triangular edges (query i attends to keys j <= i)
    q_id = jnp.array([i for i in range(S) for j in range(i + 1)], dtype=jnp.int32)
    k_id = jnp.array([j for i in range(S) for j in range(i + 1)], dtype=jnp.int32)

    key = jax.random.PRNGKey(0)
    keys = jax.random.split(key, 5)
    x = jax.random.normal(keys[0], (S, B, C), dtype=jnp.float32)

    def make_linear(k):
        kw, kb = jax.random.split(k)
        w = jax.random.normal(kw, (C, C), dtype=jnp.float32) * (1.0 / C ** 0.5)
        b_ = jax.random.normal(kb, (C,), dtype=jnp.float32) * 0.01
        return w, b_

    wq, bq = make_linear(keys[1])
    wk, bk = make_linear(keys[2])
    wv, bv = make_linear(keys[3])
    wx, bx = make_linear(keys[4])
    params = (wq, bq, wk, bk, wv, bv, wx, bx)

    # small edge_block so the test exercises the multi-block edge grid + running max
    out = sparse_multihead_attention_forward(x, params, q_id, k_id, H, edge_block=16)
    out = jax.block_until_ready(out)

    ref = ref_forward(x, params, q_id, k_id, H)
    err = float(jnp.max(jnp.abs(out - ref)))
    assert out.shape == (S, B, C)
    assert jnp.allclose(out, ref, rtol=2e-4, atol=2e-4), f"max abs err {err}"
    print("KERNEL_OK")
</pallas_src>

<mosaic_0001>
module attributes {stable_mosaic.version = 11 : i64} {
  func.func @_sparse_mha_kernel(%arg0: i32, %arg1: i32, %arg2: memref<16x1xi32, #tpu.memory_space<vmem>>, %arg3: memref<16x1xi32, #tpu.memory_space<vmem>>, %arg4: memref<1x8x32xf32, #tpu.memory_space<vmem>>, %arg5: memref<32x32xf32, #tpu.memory_space<vmem>>, %arg6: memref<1x32xf32, #tpu.memory_space<vmem>>, %arg7: memref<32x32xf32, #tpu.memory_space<vmem>>, %arg8: memref<1x32xf32, #tpu.memory_space<vmem>>, %arg9: memref<32x32xf32, #tpu.memory_space<vmem>>, %arg10: memref<1x32xf32, #tpu.memory_space<vmem>>, %arg11: memref<32x32xf32, #tpu.memory_space<vmem>>, %arg12: memref<1x32xf32, #tpu.memory_space<vmem>>, %arg13: memref<1x8x32xf32, #tpu.memory_space<vmem>>, %arg14: memref<8x32xf32, #tpu.memory_space<vmem>>, %arg15: memref<8x32xf32, #tpu.memory_space<vmem>>, %arg16: memref<8x32xf32, #tpu.memory_space<vmem>>, %arg17: memref<8x32xf32, #tpu.memory_space<vmem>>, %arg18: memref<8x32xf32, #tpu.memory_space<vmem>>, %arg19: memref<1x1xf32, #tpu.memory_space<vmem>>) attributes {dimension_semantics = [#tpu.dimension_semantics<parallel>, #tpu.dimension_semantics<arbitrary>], iteration_bounds = array<i64: 2, 3>, scalar_prefetch = 0 : i64, scratch_operands = 6 : i64, tpu.core_type = #tpu.core_type<tc>, window_params = [{transform_indices = @transform_0, window_bounds = array<i64: 16, 1>}, {transform_indices = @transform_1, window_bounds = array<i64: 16, 1>}, {transform_indices = @transform_2, window_bounds = array<i64: 1, 8, 32>}, {pipeline_mode = #tpu.pipeline_mode<synchronous>, transform_indices = @transform_3, window_bounds = array<i64: 32, 32>}, {pipeline_mode = #tpu.pipeline_mode<synchronous>, transform_indices = @transform_4, window_bounds = array<i64: 1, 32>}, {pipeline_mode = #tpu.pipeline_mode<synchronous>, transform_indices = @transform_5, window_bounds = array<i64: 32, 32>}, {pipeline_mode = #tpu.pipeline_mode<synchronous>, transform_indices = @transform_6, window_bounds = array<i64: 1, 32>}, {pipeline_mode = #tpu.pipeline_mode<synchronous>, transform_indices = @transform_7, window_bounds = array<i64: 32, 32>}, {pipeline_mode = #tpu.pipeline_mode<synchronous>, transform_indices = @transform_8, window_bounds = array<i64: 1, 32>}, {pipeline_mode = #tpu.pipeline_mode<synchronous>, transform_indices = @transform_9, window_bounds = array<i64: 32, 32>}, {pipeline_mode = #tpu.pipeline_mode<synchronous>, transform_indices = @transform_10, window_bounds = array<i64: 1, 32>}, {transform_indices = @transform_11, window_bounds = array<i64: 1, 8, 32>}]} {
    %c0_i32 = arith.constant 0 : i32
    %0 = arith.cmpi eq, %arg1, %c0_i32 : i32
    %1 = arith.extui %0 : i1 to i32
    %c0_i32_0 = arith.constant 0 : i32
    %2 = arith.cmpi ne, %1, %c0_i32_0 : i32
    scf.if %2 {
      %c0_35 = arith.constant 0 : index
      %c0_36 = arith.constant 0 : index
      %c0_37 = arith.constant 0 : index
      %84 = vector.load %arg4[%c0_35, %c0_36, %c0_37] : memref<1x8x32xf32, #tpu.memory_space<vmem>>, vector<1x8x32xf32>
      %85 = vector.shape_cast %84 : vector<1x8x32xf32> to vector<8x32xf32>
      %c0_38 = arith.constant 0 : index
      %c0_39 = arith.constant 0 : index
      %86 = vector.load %arg5[%c0_38, %c0_39] : memref<32x32xf32, #tpu.memory_space<vmem>>, vector<32x32xf32>
      %cst_40 = arith.constant dense<0.000000e+00> : vector<8x32xf32>
      %87 = tpu.matmul %85, %86, %cst_40 {dimension_numbers = #tpu.dot_dimension_numbers<[1], [0], [0], [1], [0, 0, 1, 1], [], []>} : vector<8x32xf32>, vector<32x32xf32>, vector<8x32xf32> -> vector<8x32xf32>
      %c0_41 = arith.constant 0 : index
      %c0_42 = arith.constant 0 : index
      %88 = vector.load %arg6[%c0_41, %c0_42] : memref<1x32xf32, #tpu.memory_space<vmem>>, vector<1x32xf32>
      %89 = vector.broadcast %88 : vector<1x32xf32> to vector<8x32xf32>
      %90 = arith.addf %87, %89 : vector<8x32xf32>
      %c0_43 = arith.constant 0 : index
      %c0_44 = arith.constant 0 : index
      %91 = vector.load %arg14[%c0_43, %c0_44] : memref<8x32xf32, #tpu.memory_space<vmem>>, vector<8x32xf32>
      tpu.vector_store %arg14[%c0_43, %c0_44], %90 {strides = array<i32>} : memref<8x32xf32, #tpu.memory_space<vmem>>, vector<8x32xf32>,
      %c0_45 = arith.constant 0 : index
      %c0_46 = arith.constant 0 : index
      %92 = vector.load %arg7[%c0_45, %c0_46] : memref<32x32xf32, #tpu.memory_space<vmem>>, vector<32x32xf32>
      %cst_47 = arith.constant dense<0.000000e+00> : vector<8x32xf32>
      %93 = tpu.matmul %85, %92, %cst_47 {dimension_numbers = #tpu.dot_dimension_numbers<[1], [0], [0], [1], [0, 0, 1, 1], [], []>} : vector<8x32xf32>, vector<32x32xf32>, vector<8x32xf32> -> vector<8x32xf32>
      %c0_48 = arith.constant 0 : index
      %c0_49 = arith.constant 0 : index
      %94 = vector.load %arg8[%c0_48, %c0_49] : memref<1x32xf32, #tpu.memory_space<vmem>>, vector<1x32xf32>
      %95 = vector.broadcast %94 : vector<1x32xf32> to vector<8x32xf32>
      %96 = arith.addf %93, %95 : vector<8x32xf32>
      %c0_50 = arith.constant 0 : index
      %c0_51 = arith.constant 0 : index
      %97 = vector.load %arg15[%c0_50, %c0_51] : memref<8x32xf32, #tpu.memory_space<vmem>>, vector<8x32xf32>
      tpu.vector_store %arg15[%c0_50, %c0_51], %96 {strides = array<i32>} : memref<8x32xf32, #tpu.memory_space<vmem>>, vector<8x32xf32>,
      %c0_52 = arith.constant 0 : index
      %c0_53 = arith.constant 0 : index
      %98 = vector.load %arg9[%c0_52, %c0_53] : memref<32x32xf32, #tpu.memory_space<vmem>>, vector<32x32xf32>
      %cst_54 = arith.constant dense<0.000000e+00> : vector<8x32xf32>
      %99 = tpu.matmul %85, %98, %cst_54 {dimension_numbers = #tpu.dot_dimension_numbers<[1], [0], [0], [1], [0, 0, 1, 1], [], []>} : vector<8x32xf32>, vector<32x32xf32>, vector<8x32xf32> -> vector<8x32xf32>
      %c0_55 = arith.constant 0 : index
      %c0_56 = arith.constant 0 : index
      %100 = vector.load %arg10[%c0_55, %c0_56] : memref<1x32xf32, #tpu.memory_space<vmem>>, vector<1x32xf32>
      %101 = vector.broadcast %100 : vector<1x32xf32> to vector<8x32xf32>
      %102 = arith.addf %99, %101 : vector<8x32xf32>
      %c0_57 = arith.constant 0 : index
      %c0_58 = arith.constant 0 : index
      %103 = vector.load %arg16[%c0_57, %c0_58] : memref<8x32xf32, #tpu.memory_space<vmem>>, vector<8x32xf32>
      tpu.vector_store %arg16[%c0_57, %c0_58], %102 {strides = array<i32>} : memref<8x32xf32, #tpu.memory_space<vmem>>, vector<8x32xf32>,
      %cst_59 = arith.constant 0.000000e+00 : f32
      %104 = vector.broadcast %cst_59 : f32 to vector<8x32xf32>
      %c0_60 = arith.constant 0 : index
      %c0_61 = arith.constant 0 : index
      %105 = vector.load %arg17[%c0_60, %c0_61] : memref<8x32xf32, #tpu.memory_space<vmem>>, vector<8x32xf32>
      tpu.vector_store %arg17[%c0_60, %c0_61], %104 {strides = array<i32>} : memref<8x32xf32, #tpu.memory_space<vmem>>, vector<8x32xf32>,
      %cst_62 = arith.constant 0.000000e+00 : f32
      %106 = vector.broadcast %cst_62 : f32 to vector<8x32xf32>
      %c0_63 = arith.constant 0 : index
      %c0_64 = arith.constant 0 : index
      %107 = vector.load %arg18[%c0_63, %c0_64] : memref<8x32xf32, #tpu.memory_space<vmem>>, vector<8x32xf32>
      tpu.vector_store %arg18[%c0_63, %c0_64], %106 {strides = array<i32>} : memref<8x32xf32, #tpu.memory_space<vmem>>, vector<8x32xf32>,
      %cst_65 = arith.constant -1.000000e+30 : f32
      %108 = vector.broadcast %cst_65 : f32 to vector<1x1xf32>
      %c0_66 = arith.constant 0 : index
      %c0_67 = arith.constant 0 : index
      %109 = vector.load %arg19[%c0_66, %c0_67] : memref<1x1xf32, #tpu.memory_space<vmem>>, vector<1x1xf32>
      tpu.vector_store %arg19[%c0_66, %c0_67], %108 {strides = array<i32>} : memref<1x1xf32, #tpu.memory_space<vmem>>, vector<1x1xf32>,
    } else {
    }
    %3 = tpu.iota {dimensions = array<i32: 1>} : vector<16x8xi32>
    %c0 = arith.constant 0 : index
    %c0_1 = arith.constant 0 : index
    %4 = vector.load %arg2[%c0, %c0_1] : memref<16x1xi32, #tpu.memory_space<vmem>>, vector<16x1xi32>
    %5 = vector.broadcast %4 : vector<16x1xi32> to vector<16x8xi32>
    %6 = arith.cmpi eq, %5, %3 : vector<16x8xi32>
    %7 = arith.extui %6 : vector<16x8xi1> to vector<16x8xi32>
    %8 = arith.sitofp %7 : vector<16x8xi32> to vector<16x8xf32>
    %c0_2 = arith.constant 0 : index
    %c0_3 = arith.constant 0 : index
    %9 = vector.load %arg3[%c0_2, %c0_3] : memref<16x1xi32, #tpu.memory_space<vmem>>, vector<16x1xi32>
    %10 = vector.broadcast %9 : vector<16x1xi32> to vector<16x8xi32>
    %11 = arith.cmpi eq, %10, %3 : vector<16x8xi32>
    %12 = arith.extui %11 : vector<16x8xi1> to vector<16x8xi32>
    %13 = arith.sitofp %12 : vector<16x8xi32> to vector<16x8xf32>
    %c0_4 = arith.constant 0 : index
    %c0_5 = arith.constant 0 : index
    %14 = vector.load %arg14[%c0_4, %c0_5] : memref<8x32xf32, #tpu.memory_space<vmem>>, vector<8x32xf32>
    %cst = arith.constant dense<0.000000e+00> : vector<16x32xf32>
    %15 = tpu.matmul %8, %14, %cst {dimension_numbers = #tpu.dot_dimension_numbers<[1], [0], [0], [1], [0, 0, 1, 1], [], []>} : vector<16x8xf32>, vector<8x32xf32>, vector<16x32xf32> -> vector<16x32xf32>
    %c0_6 = arith.constant 0 : index
    %c0_7 = arith.constant 0 : index
    %16 = vector.load %arg15[%c0_6, %c0_7] : memref<8x32xf32, #tpu.memory_space<vmem>>, vector<8x32xf32>
    %cst_8 = arith.constant dense<0.000000e+00> : vector<16x32xf32>
    %17 = tpu.matmul %13, %16, %cst_8 {dimension_numbers = #tpu.dot_dimension_numbers<[1], [0], [0], [1], [0, 0, 1, 1], [], []>} : vector<16x8xf32>, vector<8x32xf32>, vector<16x32xf32> -> vector<16x32xf32>
    %c0_9 = arith.constant 0 : index
    %c0_10 = arith.constant 0 : index
    %18 = vector.load %arg16[%c0_9, %c0_10] : memref<8x32xf32, #tpu.memory_space<vmem>>, vector<8x32xf32>
    %cst_11 = arith.constant dense<0.000000e+00> : vector<16x32xf32>
    %19 = tpu.matmul %13, %18, %cst_11 {dimension_numbers = #tpu.dot_dimension_numbers<[1], [0], [0], [1], [0, 0, 1, 1], [], []>} : vector<16x8xf32>, vector<8x32xf32>, vector<16x32xf32> -> vector<16x32xf32>
    %20 = tpu.iota {dimensions = array<i32: 0>} : vector<32x32xi32>
    %21 = tpu.iota {dimensions = array<i32: 1>} : vector<32x32xi32>
    %c0_i32_12 = arith.constant 0 : i32
    %22 = vector.broadcast %c0_i32_12 : i32 to vector<32x32xi32>
    %c8_i32 = arith.constant 8 : i32
    %23 = vector.broadcast %c8_i32 : i32 to vector<32x32xi32>
    %24 = arith.cmpi sge, %20, %23 : vector<32x32xi32>
    %25 = arith.extui %24 : vector<32x32xi1> to vector<32x32xi32>
    %26 = arith.addi %22, %25 : vector<32x32xi32>
    %c16_i32 = arith.constant 16 : i32
    %27 = vector.broadcast %c16_i32 : i32 to vector<32x32xi32>
    %28 = arith.cmpi sge, %20, %27 : vector<32x32xi32>
    %29 = arith.extui %28 : vector<32x32xi1> to vector<32x32xi32>
    %30 = arith.addi %26, %29 : vector<32x32xi32>
    %c24_i32 = arith.constant 24 : i32
    %31 = vector.broadcast %c24_i32 : i32 to vector<32x32xi32>
    %32 = arith.cmpi sge, %20, %31 : vector<32x32xi32>
    %33 = arith.extui %32 : vector<32x32xi1> to vector<32x32xi32>
    %34 = arith.addi %30, %33 : vector<32x32xi32>
    %c0_i32_13 = arith.constant 0 : i32
    %35 = vector.broadcast %c0_i32_13 : i32 to vector<32x32xi32>
    %c8_i32_14 = arith.constant 8 : i32
    %36 = vector.broadcast %c8_i32_14 : i32 to vector<32x32xi32>
    %37 = arith.cmpi sge, %21, %36 : vector<32x32xi32>
    %38 = arith.extui %37 : vector<32x32xi1> to vector<32x32xi32>
    %39 = arith.addi %35, %38 : vector<32x32xi32>
    %c16_i32_15 = arith.constant 16 : i32
    %40 = vector.broadcast %c16_i32_15 : i32 to vector<32x32xi32>
    %41 = arith.cmpi sge, %21, %40 : vector<32x32xi32>
    %42 = arith.extui %41 : vector<32x32xi1> to vector<32x32xi32>
    %43 = arith.addi %39, %42 : vector<32x32xi32>
    %c24_i32_16 = arith.constant 24 : i32
    %44 = vector.broadcast %c24_i32_16 : i32 to vector<32x32xi32>
    %45 = arith.cmpi sge, %21, %44 : vector<32x32xi32>
    %46 = arith.extui %45 : vector<32x32xi1> to vector<32x32xi32>
    %47 = arith.addi %43, %46 : vector<32x32xi32>
    %48 = arith.cmpi eq, %34, %47 : vector<32x32xi32>
    %49 = arith.extui %48 : vector<32x32xi1> to vector<32x32xi32>
    %50 = arith.sitofp %49 : vector<32x32xi32> to vector<32x32xf32>
    %51 = arith.mulf %15, %17 : vector<16x32xf32>
    %cst_17 = arith.constant dense<0.000000e+00> : vector<16x32xf32>
    %52 = tpu.matmul %51, %50, %cst_17 {dimension_numbers = #tpu.dot_dimension_numbers<[1], [0], [0], [1], [0, 0, 1, 1], [], []>} : vector<16x32xf32>, vector<32x32xf32>, vector<16x32xf32> -> vector<16x32xf32>
    %cst_18 = arith.constant 0.353553385 : f32
    %53 = vector.broadcast %cst_18 : f32 to vector<16x32xf32>
    %54 = arith.mulf %52, %53 : vector<16x32xf32>
    %c0_19 = arith.constant 0 : index
    %c0_20 = arith.constant 0 : index
    %55 = vector.load %arg19[%c0_19, %c0_20] : memref<1x1xf32, #tpu.memory_space<vmem>>, vector<1x1xf32>
    %56 = vector.shape_cast %54 : vector<16x32xf32> to vector<1x16x32xf32>
    %cst_21 = arith.constant dense<0xFF800000> : vector<1xf32>
    %57 = vector.multi_reduction <maximumf>, %56, %cst_21 [1, 2] : vector<1x16x32xf32> to vector<1xf32>
    %58 = vector.shape_cast %57 : vector<1xf32> to vector<1x1x1xf32>
    %59 = vector.extract %58[0, 0, 0] : f32 from vector<1x1x1xf32>
    %60 = vector.broadcast %59 : f32 to vector<1x1xf32>
    %61 = arith.maximumf %55, %60 : vector<1x1xf32>
    %62 = arith.subf %55, %61 : vector<1x1xf32>
    %63 = math.exp %62 : vector<1x1xf32>
    %64 = vector.broadcast %61 : vector<1x1xf32> to vector<16x32xf32>
    %65 = arith.subf %54, %64 : vector<16x32xf32>
    %66 = math.exp %65 : vector<16x32xf32>
    %c0_22 = arith.constant 0 : index
    %c0_23 = arith.constant 0 : index
    %67 = vector.load %arg17[%c0_22, %c0_23] : memref<8x32xf32, #tpu.memory_space<vmem>>, vector<8x32xf32>
    %68 = vector.broadcast %63 : vector<1x1xf32> to vector<8x32xf32>
    %69 = arith.mulf %68, %67 : vector<8x32xf32>
    %70 = arith.mulf %66, %19 : vector<16x32xf32>
    %cst_24 = arith.constant dense<0.000000e+00> : vector<8x32xf32>
    %71 = tpu.matmul %8, %70, %cst_24 {dimension_numbers = #tpu.dot_dimension_numbers<[0], [0], [1], [1], [0, 1, 1, 1], [], []>} : vector<16x8xf32>, vector<16x32xf32>, vector<8x32xf32> -> vector<8x32xf32>
    %72 = arith.addf %69, %71 : vector<8x32xf32>
    %c0_25 = arith.constant 0 : index
    %c0_26 = arith.constant 0 : index
    %73 = vector.load %arg17[%c0_25, %c0_26] : memref<8x32xf32, #tpu.memory_space<vmem>>, vector<8x32xf32>
    tpu.vector_store %arg17[%c0_25, %c0_26], %72 {strides = array<i32>} : memref<8x32xf32, #tpu.memory_space<vmem>>, vector<8x32xf32>,
    %c0_27 = arith.constant 0 : index
    %c0_28 = arith.constant 0 : index
    %74 = vector.load %arg18[%c0_27, %c0_28] : memref<8x32xf32, #tpu.memory_space<vmem>>, vector<8x32xf32>
    %75 = vector.broadcast %63 : vector<1x1xf32> to vector<8x32xf32>
    %76 = arith.mulf %75, %74 : vector<8x32xf32>
    %cst_29 = arith.constant dense<0.000000e+00> : vector<8x32xf32>
    %77 = tpu.matmul %8, %66, %cst_29 {dimension_numbers = #tpu.dot_dimension_numbers<[0], [0], [1], [1], [0, 1, 1, 1], [], []>} : vector<16x8xf32>, vector<16x32xf32>, vector<8x32xf32> -> vector<8x32xf32>
    %78 = arith.addf %76, %77 : vector<8x32xf32>
    %c0_30 = arith.constant 0 : index
    %c0_31 = arith.constant 0 : index
    %79 = vector.load %arg18[%c0_30, %c0_31] : memref<8x32xf32, #tpu.memory_space<vmem>>, vector<8x32xf32>
    tpu.vector_store %arg18[%c0_30, %c0_31], %78 {strides = array<i32>} : memref<8x32xf32, #tpu.memory_space<vmem>>, vector<8x32xf32>,
    %c0_32 = arith.constant 0 : index
    %c0_33 = arith.constant 0 : index
    %80 = vector.load %arg19[%c0_32, %c0_33] : memref<1x1xf32, #tpu.memory_space<vmem>>, vector<1x1xf32>
    tpu.vector_store %arg19[%c0_32, %c0_33], %61 {strides = array<i32>} : memref<1x1xf32, #tpu.memory_space<vmem>>, vector<1x1xf32>,
    %c2_i32 = arith.constant 2 : i32
    %81 = arith.cmpi eq, %arg1, %c2_i32 : i32
    %82 = arith.extui %81 : i1 to i32
    %c0_i32_34 = arith.constant 0 : i32
    %83 = arith.cmpi ne, %82, %c0_i32_34 : i32
    scf.if %83 {
      %c0_35 = arith.constant 0 : index
      %c0_36 = arith.constant 0 : index
      %84 = vector.load %arg17[%c0_35, %c0_36] : memref<8x32xf32, #tpu.memory_space<vmem>>, vector<8x32xf32>
      %c0_37 = arith.constant 0 : index
      %c0_38 = arith.constant 0 : index
      %85 = vector.load %arg18[%c0_37, %c0_38] : memref<8x32xf32, #tpu.memory_space<vmem>>, vector<8x32xf32>
      %86 = tpu.reciprocal %85 : vector<8x32xf32> -> vector<8x32xf32>
      %87 = arith.mulf %84, %86 : vector<8x32xf32>
      %c0_39 = arith.constant 0 : index
      %c0_40 = arith.constant 0 : index
      %88 = vector.load %arg11[%c0_39, %c0_40] : memref<32x32xf32, #tpu.memory_space<vmem>>, vector<32x32xf32>
      %cst_41 = arith.constant dense<0.000000e+00> : vector<8x32xf32>
      %89 = tpu.matmul %87, %88, %cst_41 {dimension_numbers = #tpu.dot_dimension_numbers<[1], [0], [0], [1], [0, 0, 1, 1], [], []>} : vector<8x32xf32>, vector<32x32xf32>, vector<8x32xf32> -> vector<8x32xf32>
      %c0_42 = arith.constant 0 : index
      %c0_43 = arith.constant 0 : index
      %90 = vector.load %arg12[%c0_42, %c0_43] : memref<1x32xf32, #tpu.memory_space<vmem>>, vector<1x32xf32>
      %91 = vector.broadcast %90 : vector<1x32xf32> to vector<8x32xf32>
      %92 = arith.addf %89, %91 : vector<8x32xf32>
      %c0_44 = arith.constant 0 : index
      %c0_45 = arith.constant 0 : index
      %c0_46 = arith.constant 0 : index
      %93 = vector.load %arg13[%c0_44, %c0_45, %c0_46] : memref<1x8x32xf32, #tpu.memory_space<vmem>>, vector<1x8x32xf32>
      %94 = vector.shape_cast %93 : vector<1x8x32xf32> to vector<8x32xf32>
      %95 = vector.shape_cast %92 : vector<8x32xf32> to vector<1x8x32xf32>
      tpu.vector_store %arg13[%c0_44, %c0_45, %c0_46], %95 {strides = array<i32>} : memref<1x8x32xf32, #tpu.memory_space<vmem>>, vector<1x8x32xf32>,
    } else {
    }
    return
  }
  func.func @transform_0(%arg0: i32, %arg1: i32) -> (i32, i32) {
    %c0_i32 = arith.constant 0 : i32
    %c0_i32_0 = arith.constant 0 : i32
    return %arg1, %c0_i32 : i32, i32
  }
  func.func @transform_1(%arg0: i32, %arg1: i32) -> (i32, i32) {
    %c0_i32 = arith.constant 0 : i32
    %c0_i32_0 = arith.constant 0 : i32
    return %arg1, %c0_i32 : i32, i32
  }
  func.func @transform_2(%arg0: i32, %arg1: i32) -> (i32, i32, i32) {
    %c0_i32 = arith.constant 0 : i32
    %c0_i32_0 = arith.constant 0 : i32
    %c0_i32_1 = arith.constant 0 : i32
    return %arg0, %c0_i32, %c0_i32_0 : i32, i32, i32
  }
  func.func @transform_3(%arg0: i32, %arg1: i32) -> (i32, i32) {
    %c0_i32 = arith.constant 0 : i32
    %c0_i32_0 = arith.constant 0 : i32
    %c0_i32_1 = arith.constant 0 : i32
    return %c0_i32, %c0_i32_0 : i32, i32
  }
  func.func @transform_4(%arg0: i32, %arg1: i32) -> (i32, i32) {
    %c0_i32 = arith.constant 0 : i32
    %c0_i32_0 = arith.constant 0 : i32
    %c0_i32_1 = arith.constant 0 : i32
    return %c0_i32, %c0_i32_0 : i32, i32
  }
  func.func @transform_5(%arg0: i32, %arg1: i32) -> (i32, i32) {
    %c0_i32 = arith.constant 0 : i32
    %c0_i32_0 = arith.constant 0 : i32
    %c0_i32_1 = arith.constant 0 : i32
    return %c0_i32, %c0_i32_0 : i32, i32
  }
  func.func @transform_6(%arg0: i32, %arg1: i32) -> (i32, i32) {
    %c0_i32 = arith.constant 0 : i32
    %c0_i32_0 = arith.constant 0 : i32
    %c0_i32_1 = arith.constant 0 : i32
    return %c0_i32, %c0_i32_0 : i32, i32
  }
  func.func @transform_7(%arg0: i32, %arg1: i32) -> (i32, i32) {
    %c0_i32 = arith.constant 0 : i32
    %c0_i32_0 = arith.constant 0 : i32
    %c0_i32_1 = arith.constant 0 : i32
    return %c0_i32, %c0_i32_0 : i32, i32
  }
  func.func @transform_8(%arg0: i32, %arg1: i32) -> (i32, i32) {
    %c0_i32 = arith.constant 0 : i32
    %c0_i32_0 = arith.constant 0 : i32
    %c0_i32_1 = arith.constant 0 : i32
    return %c0_i32, %c0_i32_0 : i32, i32
  }
  func.func @transform_9(%arg0: i32, %arg1: i32) -> (i32, i32) {
    %c0_i32 = arith.constant 0 : i32
    %c0_i32_0 = arith.constant 0 : i32
    %c0_i32_1 = arith.constant 0 : i32
    return %c0_i32, %c0_i32_0 : i32, i32
  }
  func.func @transform_10(%arg0: i32, %arg1: i32) -> (i32, i32) {
    %c0_i32 = arith.constant 0 : i32
    %c0_i32_0 = arith.constant 0 : i32
    %c0_i32_1 = arith.constant 0 : i32
    return %c0_i32, %c0_i32_0 : i32, i32
  }
  func.func @transform_11(%arg0: i32, %arg1: i32) -> (i32, i32, i32) {
    %c0_i32 = arith.constant 0 : i32
    %c0_i32_0 = arith.constant 0 : i32
    %c0_i32_1 = arith.constant 0 : i32
    return %arg0, %c0_i32, %c0_i32_0 : i32, i32, i32
  }
}

</mosaic_0001>

<llo_original>
// kernel: tpu_custom_call.1
$region0: #{tpu_custom_call.1}
  #allocation0 [shape = 'u32[]', space=smem, size = 0x4, offset = 0x4, fixed_abs, tag = 'smem constant byte address 0x4 - core index']
  #allocation1 [shape = 'u32[72,128]{1,0:T(1,128)}', space=vmem, size = 0x9000, scoped, tag = 'internal scratch']
  #allocation2 [shape = 'f32[8,32]{1,0:T(8,128)}', space=vmem, size = 0x1000, scoped, tag = 'scratch operand']
  #allocation3 [shape = 'f32[8,32]{1,0:T(8,128)}', space=vmem, size = 0x1000, scoped, tag = 'scratch operand']
  #allocation4 [shape = 'f32[8,32]{1,0:T(8,128)}', space=vmem, size = 0x1000, scoped, tag = 'scratch operand']
  #allocation5 [shape = 'f32[8,32]{1,0:T(8,128)}', space=vmem, size = 0x1000, scoped, tag = 'scratch operand']
  #allocation6 [shape = 'f32[8,32]{1,0:T(8,128)}', space=vmem, size = 0x1000, scoped, tag = 'scratch operand']
  #allocation7 [shape = 'f32[1,1]{1,0:T(1,128)}', space=vmem, size = 0x200, scoped, tag = 'scratch operand']
  %s0 = inlined_call_operand.vmem [shape: s32[48,1], index: 0, kind: input, shape index: {}]
  %s1 = inlined_call_operand.vmem [shape: s32[48,1], index: 1, kind: input, shape index: {}]
  %s2 = inlined_call_operand.hbm [shape: f32[2,8,32], index: 2, kind: input, shape index: {}]
  %s3 = inlined_call_operand.vmem [shape: f32[32,32], index: 3, kind: input, shape index: {}]
  %s4 = inlined_call_operand.vmem [shape: f32[1,32], index: 4, kind: input, shape index: {}]
  %s5 = inlined_call_operand.vmem [shape: f32[32,32], index: 5, kind: input, shape index: {}]
  %s6 = inlined_call_operand.vmem [shape: f32[1,32], index: 6, kind: input, shape index: {}]
  %s7 = inlined_call_operand.vmem [shape: f32[32,32], index: 7, kind: input, shape index: {}]
  %s8 = inlined_call_operand.vmem [shape: f32[1,32], index: 8, kind: input, shape index: {}]
  %s9 = inlined_call_operand.hbm [shape: f32[32,32], index: 9, kind: input, shape index: {}]
  %s10 = inlined_call_operand.vmem [shape: f32[1,32], index: 10, kind: input, shape index: {}]
  %s11 = inlined_call_operand.hbm [shape: f32[2,8,32], index: 11, kind: output, shape index: {}]
  %s12 = sld [smem:[#allocation0]]
  $region93: #{tpu_custom_call.1} parent=0
    _
  %s14 = ssub.s32 1, %s12
  %s15 = scalar_select 0, %s14, %s12
  $region1: #{tpu_custom_call.1} parent=0
    #allocation8 [shape = 'u8[8192]{0}', space=vmem, size = 0x2000, scoped, tag = 'input window, operand 2']
    #allocation9 [shape = 's32[2]{0}', space=sflag, size = 0x8, scoped, tag = 'scoped memory for tpu_custom_call.1']
    #allocation10 [shape = 's32[2]{0}', space=sflag, size = 0x8, scoped, tag = 'scoped memory for tpu_custom_call.1']
    #allocation11 [shape = 'u8[16384]{0}', space=vmem, size = 0x4000, scoped, tag = 'input window, operand 9, single buffered']
    #allocation12 [shape = 's32[1]{0}', space=sflag, size = 0x4, scoped, tag = 'scoped memory for tpu_custom_call.1']
    #allocation13 [shape = 'u8[8192]{0}', space=vmem, size = 0x2000, scoped, tag = 'output window, operand 0']
    %16 = vsyncpa [#allocation9], 0
    %s17 = scalar_lea.sflag [#allocation9], 1
    %18 = vsyncpa %s17, 0
    %19 = vsyncpa [#allocation12], 0
    %20 = vsyncpa [#allocation10], 0
    %s21 = scalar_lea.sflag [#allocation10], 1
    %22 = vsyncpa %s21, 0
    loop: start=0, step=1, limit=8
    $region2: #{tpu_custom_call.1} parent=1 // loop_pre_header
      _
    $region3: #{tpu_custom_call.1} parent=1 // loop_header
      %s24 = sphi 0, %s28
      %p25 = scmp.ge.s32.totalorder %s24, 8
      %s31 = sphi 0, %s43
      %s32 = sphi 0, %s39
      %s33 = sphi 0, %s31
      %s34 = sphi 0, %s32
      %s35 = sphi 0, %s33
      %s36 = sphi 0, %s34
      %s46 = sphi 0, %s48
      %s49 = sphi 0, %s46
      %s50 = sphi 0, %s49
      %s66 = sphi 0, %s50
      %s72 = sphi 0, %s74
      %s75 = sphi 0, %s72
      %s76 = sphi 0, %s75
      %s92 = sphi 0, %s76
      %s98 = sphi 0, %s100
      %s101 = sphi 0, %s98
      %s102 = sphi 0, %s101
      %s118 = sphi 0, %s102
      %s122 = sphi 0, %s122
      %s124 = sphi 0, %s122
      %s125 = sphi 0, %s124
      %s139 = sphi 0, %s125
      %s143 = sphi 0, %s143
      %s145 = sphi 0, %s143
      %s146 = sphi 0, %s145
      %s160 = sphi 0, %s146
      %s164 = sphi 0, %s164
      %s166 = sphi 0, %s164
      %s167 = sphi 0, %s166
      %s181 = sphi 0, %s167
      %s185 = sphi 0, %s185
      %s187 = sphi 0, %s185
      %s188 = sphi 0, %s187
      %s202 = sphi 0, %s188
      %s206 = sphi 0, %s206
      %s208 = sphi 0, %s206
      %s209 = sphi 0, %s208
      %s223 = sphi 0, %s209
      %s227 = sphi 0, %s227
      %s229 = sphi 0, %s227
      %s230 = sphi 0, %s229
      %s244 = sphi 0, %s230
      %s248 = sphi 0, %s248
      %s250 = sphi 0, %s248
      %s251 = sphi 0, %s250
      %s265 = sphi 0, %s251
      %s269 = sphi 0, %s269
      %s271 = sphi 0, %s269
      %s272 = sphi 0, %s271
      %s286 = sphi 0, %s272
      %s292 = sphi 0, %s294
      %s295 = sphi 0, %s292
      %s296 = sphi 0, %s295
      %s312 = sphi 0, %s296
    $region4: #{tpu_custom_call.1} parent=1 // loop_header_branch
      %27 = sbr.rel (%p25) target = $region8
    $region5: #{tpu_custom_call.1} parent=1 // loop_body
      %s29 = ssub.s32 %s24, 1
      %s30 = ssub.s32 %s24, 2
      %s37 = sadd.s32 1, %s32
      %p38 = scmp.ge.s32.totalorder %s37, 3
      %s39 = scalar_select %p38, 0, %s37
      %s40 = sadd.s32 1, %s31
      %s41 = scalar_select %p38, %s40, %s31
      %p42 = scmp.ge.s32.totalorder %s41, 2
      %s43 = scalar_select %p42, 0, %s41
      %s44 = ssub.s32 %s32, %s39
      %p45 = scmp.eq.s32.totalorder %s44, 0
      %s47 = sadd.s32 %s46, 1
      %s48 = scalar_select %p45, %s46, %s47
      %p51 = pneg %p45
      %p52 = scmp.eq.s32.totalorder %s24, 5
      %p53 = por %p51, %p52
      %p54 = scmp.ne.s32.totalorder %s46, %s49
      %p55 = scmp.eq.s32.totalorder %s24, 0
      %p56 = por %p54, %p55
      %p57 = scmp.ne.s32.totalorder %s46, %s49
      %p58 = scmp.eq.s32.totalorder %s29, 5
      %p59 = por %p57, %p58
      %p60 = scmp.ne.s32.totalorder %s49, %s50
      %p61 = scmp.eq.s32.totalorder %s29, 0
      %p62 = por %p60, %p61
      %p63 = scmp.ne.s32.totalorder %s49, %s50
      %p64 = scmp.eq.s32.totalorder %s30, 5
      %p65 = por %p63, %p64
      %p67 = scmp.ne.s32.totalorder %s50, %s66
      %p68 = scmp.eq.s32.totalorder %s30, 0
      %p69 = por %p67, %p68
      %s70 = ssub.s32 %s32, %s39
      %p71 = scmp.eq.s32.totalorder %s70, 0
      %s73 = sadd.s32 %s72, 1
      %s74 = scalar_select %p71, %s72, %s73
      %p77 = pneg %p71
      %p78 = scmp.eq.s32.totalorder %s24, 5
      %p79 = por %p77, %p78
      %p80 = scmp.ne.s32.totalorder %s72, %s75
      %p81 = scmp.eq.s32.totalorder %s24, 0
      %p82 = por %p80, %p81
      %p83 = scmp.ne.s32.totalorder %s72, %s75
      %p84 = scmp.eq.s32.totalorder %s29, 5
      %p85 = por %p83, %p84
      %p86 = scmp.ne.s32.totalorder %s75, %s76
      %p87 = scmp.eq.s32.totalorder %s29, 0
      %p88 = por %p86, %p87
      %p89 = scmp.ne.s32.totalorder %s75, %s76
      %p90 = scmp.eq.s32.totalorder %s30, 5
      %p91 = por %p89, %p90
      %p93 = scmp.ne.s32.totalorder %s76, %s92
      %p94 = scmp.eq.s32.totalorder %s30, 0
      %p95 = por %p93, %p94
      %s96 = ssub.s32 %s31, %s43
      %p97 = scmp.eq.s32.totalorder %s96, 0
      %s99 = sadd.s32 %s98, 1
      %s100 = scalar_select %p97, %s98, %s99
      %p103 = pneg %p97
      %p104 = scmp.eq.s32.totalorder %s24, 5
      %p105 = por %p103, %p104
      %p106 = scmp.ne.s32.totalorder %s98, %s101
      %p107 = scmp.eq.s32.totalorder %s24, 0
      %p108 = por %p106, %p107
      %p109 = scmp.ne.s32.totalorder %s98, %s101
      %p110 = scmp.eq.s32.totalorder %s29, 5
      %p111 = por %p109, %p110
      %p112 = scmp.ne.s32.totalorder %s101, %s102
      %p113 = scmp.eq.s32.totalorder %s29, 0
      %p114 = por %p112, %p113
      %p115 = scmp.ne.s32.totalorder %s101, %s102
      %p116 = scmp.eq.s32.totalorder %s30, 5
      %p117 = por %p115, %p116
      %p119 = scmp.ne.s32.totalorder %s102, %s118
      %p120 = scmp.eq.s32.totalorder %s30, 0
      %p121 = por %p119, %p120
      %s123 = sadd.s32 %s122, 1
      %p126 = scmp.eq.s32.totalorder %s24, 5
      %p127 = scmp.ne.s32.totalorder %s122, %s124
      %p128 = scmp.eq.s32.totalorder %s24, 0
      %p129 = por %p127, %p128
      %p130 = scmp.ne.s32.totalorder %s122, %s124
      %p131 = scmp.eq.s32.totalorder %s29, 5
      %p132 = por %p130, %p131
      %p133 = scmp.ne.s32.totalorder %s124, %s125
      %p134 = scmp.eq.s32.totalorder %s29, 0
      %p135 = por %p133, %p134
      %p136 = scmp.ne.s32.totalorder %s124, %s125
      %p137 = scmp.eq.s32.totalorder %s30, 5
      %p138 = por %p136, %p137
      %p140 = scmp.ne.s32.totalorder %s125, %s139
      %p141 = scmp.eq.s32.totalorder %s30, 0
      %p142 = por %p140, %p141
      %s144 = sadd.s32 %s143, 1
      %p147 = scmp.eq.s32.totalorder %s24, 5
      %p148 = scmp.ne.s32.totalorder %s143, %s145
      %p149 = scmp.eq.s32.totalorder %s24, 0
      %p150 = por %p148, %p149
      %p151 = scmp.ne.s32.totalorder %s143, %s145
      %p152 = scmp.eq.s32.totalorder %s29, 5
      %p153 = por %p151, %p152
      %p154 = scmp.ne.s32.totalorder %s145, %s146
      %p155 = scmp.eq.s32.totalorder %s29, 0
      %p156 = por %p154, %p155
      %p157 = scmp.ne.s32.totalorder %s145, %s146
      %p158 = scmp.eq.s32.totalorder %s30, 5
      %p159 = por %p157, %p158
      %p161 = scmp.ne.s32.totalorder %s146, %s160
      %p162 = scmp.eq.s32.totalorder %s30, 0
      %p163 = por %p161, %p162
      %s165 = sadd.s32 %s164, 1
      %p168 = scmp.eq.s32.totalorder %s24, 5
      %p169 = scmp.ne.s32.totalorder %s164, %s166
      %p170 = scmp.eq.s32.totalorder %s24, 0
      %p171 = por %p169, %p170
      %p172 = scmp.ne.s32.totalorder %s164, %s166
      %p173 = scmp.eq.s32.totalorder %s29, 5
      %p174 = por %p172, %p173
      %p175 = scmp.ne.s32.totalorder %s166, %s167
      %p176 = scmp.eq.s32.totalorder %s29, 0
      %p177 = por %p175, %p176
      %p178 = scmp.ne.s32.totalorder %s166, %s167
      %p179 = scmp.eq.s32.totalorder %s30, 5
      %p180 = por %p178, %p179
      %p182 = scmp.ne.s32.totalorder %s167, %s181
      %p183 = scmp.eq.s32.totalorder %s30, 0
      %p184 = por %p182, %p183
      %s186 = sadd.s32 %s185, 1
      %p189 = scmp.eq.s32.totalorder %s24, 5
      %p190 = scmp.ne.s32.totalorder %s185, %s187
      %p191 = scmp.eq.s32.totalorder %s24, 0
      %p192 = por %p190, %p191
      %p193 = scmp.ne.s32.totalorder %s185, %s187
      %p194 = scmp.eq.s32.totalorder %s29, 5
      %p195 = por %p193, %p194
      %p196 = scmp.ne.s32.totalorder %s187, %s188
      %p197 = scmp.eq.s32.totalorder %s29, 0
      %p198 = por %p196, %p197
      %p199 = scmp.ne.s32.totalorder %s187, %s188
      %p200 = scmp.eq.s32.totalorder %s30, 5
      %p201 = por %p199, %p200
      %p203 = scmp.ne.s32.totalorder %s188, %s202
      %p204 = scmp.eq.s32.totalorder %s30, 0
      %p205 = por %p203, %p204
      %s207 = sadd.s32 %s206, 1
      %p210 = scmp.eq.s32.totalorder %s24, 5
      %p211 = scmp.ne.s32.totalorder %s206, %s208
      %p212 = scmp.eq.s32.totalorder %s24, 0
      %p213 = por %p211, %p212
      %p214 = scmp.ne.s32.totalorder %s206, %s208
      %p215 = scmp.eq.s32.totalorder %s29, 5
      %p216 = por %p214, %p215
      %p217 = scmp.ne.s32.totalorder %s208, %s209
      %p218 = scmp.eq.s32.totalorder %s29, 0
      %p219 = por %p217, %p218
      %p220 = scmp.ne.s32.totalorder %s208, %s209
      %p221 = scmp.eq.s32.totalorder %s30, 5
      %p222 = por %p220, %p221
      %p224 = scmp.ne.s32.totalorder %s209, %s223
      %p225 = scmp.eq.s32.totalorder %s30, 0
      %p226 = por %p224, %p225
      %s228 = sadd.s32 %s227, 1
      %p231 = scmp.eq.s32.totalorder %s24, 5
      %p232 = scmp.ne.s32.totalorder %s227, %s229
      %p233 = scmp.eq.s32.totalorder %s24, 0
      %p234 = por %p232, %p233
      %p235 = scmp.ne.s32.totalorder %s227, %s229
      %p236 = scmp.eq.s32.totalorder %s29, 5
      %p237 = por %p235, %p236
      %p238 = scmp.ne.s32.totalorder %s229, %s230
      %p239 = scmp.eq.s32.totalorder %s29, 0
      %p240 = por %p238, %p239
      %p241 = scmp.ne.s32.totalorder %s229, %s230
      %p242 = scmp.eq.s32.totalorder %s30, 5
      %p243 = por %p241, %p242
      %p245 = scmp.ne.s32.totalorder %s230, %s244
      %p246 = scmp.eq.s32.totalorder %s30, 0
      %p247 = por %p245, %p246
      %s249 = sadd.s32 %s248, 1
      %p252 = scmp.eq.s32.totalorder %s24, 5
      %p253 = scmp.ne.s32.totalorder %s248, %s250
      %p254 = scmp.eq.s32.totalorder %s24, 0
      %p255 = por %p253, %p254
      %p256 = scmp.ne.s32.totalorder %s248, %s250
      %p257 = scmp.eq.s32.totalorder %s29, 5
      %p258 = por %p256, %p257
      %p259 = scmp.ne.s32.totalorder %s250, %s251
      %p260 = scmp.eq.s32.totalorder %s29, 0
      %p261 = por %p259, %p260
      %p262 = scmp.ne.s32.totalorder %s250, %s251
      %p263 = scmp.eq.s32.totalorder %s30, 5
      %p264 = por %p262, %p263
      %p266 = scmp.ne.s32.totalorder %s251, %s265
      %p267 = scmp.eq.s32.totalorder %s30, 0
      %p268 = por %p266, %p267
      %s270 = sadd.s32 %s269, 1
      %p273 = scmp.eq.s32.totalorder %s24, 5
      %p274 = scmp.ne.s32.totalorder %s269, %s271
      %p275 = scmp.eq.s32.totalorder %s24, 0
      %p276 = por %p274, %p275
      %p277 = scmp.ne.s32.totalorder %s269, %s271
      %p278 = scmp.eq.s32.totalorder %s29, 5
      %p279 = por %p277, %p278
      %p280 = scmp.ne.s32.totalorder %s271, %s272
      %p281 = scmp.eq.s32.totalorder %s29, 0
      %p282 = por %p280, %p281
      %p283 = scmp.ne.s32.totalorder %s271, %s272
      %p284 = scmp.eq.s32.totalorder %s30, 5
      %p285 = por %p283, %p284
      %p287 = scmp.ne.s32.totalorder %s272, %s286
      %p288 = scmp.eq.s32.totalorder %s30, 0
      %p289 = por %p287, %p288
      %s290 = ssub.s32 %s31, %s43
      %p291 = scmp.eq.s32.totalorder %s290, 0
      %s293 = sadd.s32 %s292, 1
      %s294 = scalar_select %p291, %s292, %s293
      %p297 = pneg %p291
      %p298 = scmp.eq.s32.totalorder %s24, 5
      %p299 = por %p297, %p298
      %p300 = scmp.ne.s32.totalorder %s292, %s295
      %p301 = scmp.eq.s32.totalorder %s24, 0
      %p302 = por %p300, %p301
      %p303 = scmp.ne.s32.totalorder %s292, %s295
      %p304 = scmp.eq.s32.totalorder %s29, 5
      %p305 = por %p303, %p304
      %p306 = scmp.ne.s32.totalorder %s295, %s296
      %p307 = scmp.eq.s32.totalorder %s29, 0
      %p308 = por %p306, %p307
      %p309 = scmp.ne.s32.totalorder %s295, %s296
      %p310 = scmp.eq.s32.totalorder %s30, 5
      %p311 = por %p309, %p310
      %p313 = scmp.ne.s32.totalorder %s296, %s312
      %p314 = scmp.eq.s32.totalorder %s30, 0
      %p315 = por %p313, %p314
      %p316 = scmp.le.s32.totalorder 1, %s24
      %p317 = scmp.lt.s32.totalorder %s24, 7
      %p318 = pnand %p316, %p317
      %p319 = pneg %p318
      // Predicated region
      $region9: #{tpu_custom_call.1} parent=5 // pred_check
        _
      $region10: #{tpu_custom_call.1} parent=5 // pred_check_branch
        %321 = sbr.rel (%p318) target = $region12
      $region11: #{tpu_custom_call.1} parent=5 // pred_region
        %s322 = ssub.s32 %s24, 1
        // Predicated region
        $region13: #{tpu_custom_call.1} parent=11 // pred_check
          %p323 = pneg %p135
        $region14: #{tpu_custom_call.1} parent=11 // pred_check_branch
          %325 = sbr.rel (%p323) target = $region16
        $region15: #{tpu_custom_call.1} parent=11 // pred_region
          _
        $region16: #{tpu_custom_call.1} parent=11 // pred_fallthru
          _
        // Predicated region
        $region17: #{tpu_custom_call.1} parent=11 // pred_check
          %p326 = pneg %p156
        $region18: #{tpu_custom_call.1} parent=11 // pred_check_branch
          %328 = sbr.rel (%p326) target = $region20
        $region19: #{tpu_custom_call.1} parent=11 // pred_region
          _
        $region20: #{tpu_custom_call.1} parent=11 // pred_fallthru
          _
        // Predicated region
        $region21: #{tpu_custom_call.1} parent=11 // pred_check
          %p329 = pneg %p177
        $region22: #{tpu_custom_call.1} parent=11 // pred_check_branch
          %331 = sbr.rel (%p329) target = $region24
        $region23: #{tpu_custom_call.1} parent=11 // pred_region
          _
        $region24: #{tpu_custom_call.1} parent=11 // pred_fallthru
          _
        // Predicated region
        $region25: #{tpu_custom_call.1} parent=11 // pred_check
          %p332 = pneg %p198
        $region26: #{tpu_custom_call.1} parent=11 // pred_check_branch
          %334 = sbr.rel (%p332) target = $region28
        $region27: #{tpu_custom_call.1} parent=11 // pred_region
          _
        $region28: #{tpu_custom_call.1} parent=11 // pred_fallthru
          _
        // Predicated region
        $region29: #{tpu_custom_call.1} parent=11 // pred_check
          %p335 = pneg %p219
        $region30: #{tpu_custom_call.1} parent=11 // pred_check_branch
          %337 = sbr.rel (%p335) target = $region32
        $region31: #{tpu_custom_call.1} parent=11 // pred_region
          _
        $region32: #{tpu_custom_call.1} parent=11 // pred_fallthru
          _
        // Predicated region
        $region33: #{tpu_custom_call.1} parent=11 // pred_check
          %p338 = pneg %p240
        $region34: #{tpu_custom_call.1} parent=11 // pred_check_branch
          %340 = sbr.rel (%p338) target = $region36
        $region35: #{tpu_custom_call.1} parent=11 // pred_region
          _
        $region36: #{tpu_custom_call.1} parent=11 // pred_fallthru
          _
        // Predicated region
        $region37: #{tpu_custom_call.1} parent=11 // pred_check
          %p341 = pneg %p261
        $region38: #{tpu_custom_call.1} parent=11 // pred_check_branch
          %343 = sbr.rel (%p341) target = $region40
        $region39: #{tpu_custom_call.1} parent=11 // pred_region
          %345 = vsyncadd [#allocation12], 0
          %s346 = sshll.u32 %s9, 4
          %s347 = int_to_ptr.hbm [resolvable:$true] %s346
          %s348 = sshll.u32 [#allocation11], 4
          %s349 = int_to_ptr.vmem [resolvable:$true] %s348
          %354 = dma.hbm_to_vmem [thread:$0]  %s347, 512, %s349, [#allocation12], 128, 128, 8
        $region40: #{tpu_custom_call.1} parent=11 // pred_fallthru
          _
        // Predicated region
        $region41: #{tpu_custom_call.1} parent=11 // pred_check
          %p355 = pneg %p282
        $region42: #{tpu_custom_call.1} parent=11 // pred_check_branch
          %357 = sbr.rel (%p355) target = $region44
        $region43: #{tpu_custom_call.1} parent=11 // pred_region
          _
        $region44: #{tpu_custom_call.1} parent=11 // pred_fallthru
          _
      $region12: #{tpu_custom_call.1} parent=5 // pred_fallthru
        _
      %p358 = scmp.lt.s32.totalorder %s24, 6
      // Predicated region
      $region45: #{tpu_custom_call.1} parent=5 // pred_check
        %p359 = pneg %p358
      $region46: #{tpu_custom_call.1} parent=5 // pred_check_branch
        %361 = sbr.rel (%p359) target = $region48
      $region47: #{tpu_custom_call.1} parent=5 // pred_region
        // Predicated region
        $region49: #{tpu_custom_call.1} parent=47 // pred_check
          %p362 = pneg %p56
        $region50: #{tpu_custom_call.1} parent=47 // pred_check_branch
          %364 = sbr.rel (%p362) target = $region52
        $region51: #{tpu_custom_call.1} parent=47 // pred_region
          %s365 = smul.u32 2, %s32
          %p366 = scmp.lt.s32.totalorder %s365, 5
          %s367 = scalar_select %p366, %s365, 5
          %s368 = smul.addr %s367, 8
          %s369 = scalar_lea.vmem %s0, %s368
          %s370 = smul.u32 2, %s32
        $region52: #{tpu_custom_call.1} parent=47 // pred_fallthru
          _
        // Predicated region
        $region53: #{tpu_custom_call.1} parent=47 // pred_check
          %p371 = pneg %p82
        $region54: #{tpu_custom_call.1} parent=47 // pred_check_branch
          %373 = sbr.rel (%p371) target = $region56
        $region55: #{tpu_custom_call.1} parent=47 // pred_region
          %s374 = smul.u32 2, %s32
          %p375 = scmp.lt.s32.totalorder %s374, 5
          %s376 = scalar_select %p375, %s374, 5
          %s377 = smul.addr %s376, 8
          %s378 = scalar_lea.vmem %s1, %s377
          %s379 = smul.u32 2, %s32
        $region56: #{tpu_custom_call.1} parent=47 // pred_fallthru
          _
        // Predicated region
        $region57: #{tpu_custom_call.1} parent=47 // pred_check
          %p380 = pneg %p108
        $region58: #{tpu_custom_call.1} parent=47 // pred_check_branch
          %382 = sbr.rel (%p380) target = $region60
        $region59: #{tpu_custom_call.1} parent=47 // pred_region
          %s383 = sand.u32 %s98, 1
          %s384 = scalar_lea.sflag [#allocation9], %s383
          %s385 = sand.u32 %s98, 1
          %s386 = smul.addr %s385, 8
          %s387 = scalar_lea.vmem [#allocation8], %s386
          %389 = vsyncadd %s384, 0
          %s390 = smul.addr %s31, 8
          %s391 = scalar_lea.hbm %s2, %s390
          %s393 = sshll.u32 %s391, 4
          %s394 = int_to_ptr.hbm [resolvable:$true] %s393
          %s395 = sshll.u32 %s387, 4
          %s396 = int_to_ptr.vmem [resolvable:$true] %s395
          %398 = dma.hbm_to_vmem [thread:$0]  %s394, 128, %s396, %s384
        $region60: #{tpu_custom_call.1} parent=47 // pred_fallthru
          _
      $region48: #{tpu_custom_call.1} parent=5 // pred_fallthru
        _
      %p399 = scmp.le.s32.totalorder 1, %s24
      %p400 = scmp.lt.s32.totalorder %s24, 7
      %p401 = pnand %p399, %p400
      %p402 = pneg %p401
      // Predicated region
      $region61: #{tpu_custom_call.1} parent=5 // pred_check
        _
      $region62: #{tpu_custom_call.1} parent=5 // pred_check_branch
        %404 = sbr.rel (%p401) target = $region64
      $region63: #{tpu_custom_call.1} parent=5 // pred_region
        %s405 = ssub.s32 %s24, 1
        %s406 = sand.u32 %s101, 1
        %s407 = scalar_lea.sflag [#allocation9], %s406
        %s408 = sand.u32 %s101, 1
        %s409 = smul.addr %s408, 8
        %s410 = scalar_lea.vmem [#allocation8], %s409
        // Predicated region
        $region65: #{tpu_custom_call.1} parent=63 // pred_check
          %p411 = pneg %p114
        $region66: #{tpu_custom_call.1} parent=63 // pred_check_branch
          %413 = sbr.rel (%p411) target = $region68
        $region67: #{tpu_custom_call.1} parent=63 // pred_region
          %415 = dma.done %s407, 128
        $region68: #{tpu_custom_call.1} parent=63 // pred_fallthru
          _
        // Predicated region
        $region69: #{tpu_custom_call.1} parent=63 // pred_check
          %p416 = pneg %p261
        $region70: #{tpu_custom_call.1} parent=63 // pred_check_branch
          %418 = sbr.rel (%p416) target = $region72
        $region71: #{tpu_custom_call.1} parent=63 // pred_region
          %420 = dma.done [#allocation12], 512
        $region72: #{tpu_custom_call.1} parent=63 // pred_fallthru
          _
        %s421 = smul.u32 2, %s34
        %p422 = scmp.lt.s32.totalorder %s421, 5
        %s423 = scalar_select %p422, %s421, 5
        %s424 = smul.addr %s423, 8
        %s425 = scalar_lea.vmem %s0, %s424
        %p426 = pneg %p62
        %p427 = pneg %p59
        %s428 = smul.u32 2, %s34
        %p429 = scmp.lt.s32.totalorder %s428, 5
        %s430 = scalar_select %p429, %s428, 5
        %s431 = smul.addr %s430, 8
        %s432 = scalar_lea.vmem %s1, %s431
        %p433 = pneg %p88
        %p434 = pneg %p85
        %s435 = sand.u32 %s101, 1
        %s436 = scalar_lea.sflag [#allocation9], %s435
        %s437 = sand.u32 %s101, 1
        %s438 = smul.addr %s437, 8
        %s439 = scalar_lea.vmem [#allocation8], %s438
        %p440 = pneg %p114
        %p441 = pneg %p111
        %p442 = pneg %p135
        %p443 = pneg %p132
        %p444 = pneg %p156
        %p445 = pneg %p153
        %p446 = pneg %p177
        %p447 = pneg %p174
        %p448 = pneg %p198
        %p449 = pneg %p195
        %p450 = pneg %p219
        %p451 = pneg %p216
        %p452 = pneg %p240
        %p453 = pneg %p237
        %p454 = pneg %p261
        %p455 = pneg %p258
        %p456 = pneg %p282
        %p457 = pneg %p279
        %p458 = pneg %p308
        %p459 = pneg %p305
        %s460 = sand.u32 %s295, 1
        %s461 = scalar_lea.sflag [#allocation10], %s460
        %s462 = sand.u32 %s295, 1
        %s463 = smul.addr %s462, 8
        %s464 = scalar_lea.vmem [#allocation13], %s463
        %s465 = smul.u32 2, %s34
        %p466 = scmp.lt.s32.totalorder %s465, 5
        %s467 = scalar_select %p466, %s465, 5
        %s468 = smul.addr %s467, 8
        %s469 = scalar_lea.vmem %s0, %s468
        %s470 = smul.u32 2, %s34
        %s471 = smul.u32 2, %s34
        %p472 = scmp.lt.s32.totalorder %s471, 5
        %s473 = scalar_select %p472, %s471, 5
        %s474 = smul.addr %s473, 8
        %s475 = scalar_lea.vmem %s1, %s474
        %s476 = smul.u32 2, %s34
        %p477 = scmp.eq.s32.totalorder %s34, 0
        // Predicated region
        $region73: #{tpu_custom_call.1} parent=63 // pred_check
          %p478 = pneg %p477
        $region74: #{tpu_custom_call.1} parent=63 // pred_check_branch
          %480 = sbr.rel (%p478) target = $region76
        $region75: #{tpu_custom_call.1} parent=63 // pred_region
          %v481 = vld [vmem:[%s410] sm:$0xff]
          %v482 = vld [vmem:[%s3] sm:$0xff]
          %v483 = vld [vmem:[%s3 + $0x8] sm:$0xff]
          %v484 = vld [vmem:[%s3 + $0x10] sm:$0xff]
          %v485 = vld [vmem:[%s3 + $0x18] sm:$0xff]
          %v486 = vld [vmem:[%s4] sm:$0x1]
          %v488 = vperm.slane %v486, 0
          %vm490 = vcmask 261120
          %v492 = vsel %vm490, %v481, 0
          %494 = vmatpush.msra.mxu0 0.0
          %495 = vmatpush.msra.mxu0 0.0
          %496 = vmatpush.msra.mxu0 0.0
          %497 = vmatpush.msra.mxu0 0.0
          %498 = vmatpush.msra.mxu0 0.0
          %499 = vmatpush.msra.mxu0 0.0
          %500 = vmatpush.msra.mxu0 0.0
          %501 = vmatpush.msra.mxu0 0.0
          %502 = vmatpush.msra.mxu0 0.0
          %503 = vmatpush.msra.mxu0 0.0
          %504 = vmatpush.msra.mxu0 0.0
          %505 = vmatpush.msra.mxu0 0.0
          %506 = vmatpush.msra.mxu0 %v485
          %507 = vmatpush.msra.mxu0 %v484
          %508 = vmatpush.msra.mxu0 %v483
          %509 = vmatpush.msra.mxu0 %v482
          %510 = vmatmul.f32.gmra.mxu0 %v492
          %v511 = vpop.f32.mrf.mxu0
          %v512 = vadd.f32 %v488, %v511
          %513 = vdwg.mxu0
          %514 = vst.msk [vmem:[#allocation2] sm:$0xff] %vm490, %v512
          %v515 = vld [vmem:[%s5] sm:$0xff]
          %v516 = vld [vmem:[%s5 + $0x8] sm:$0xff]
          %v517 = vld [vmem:[%s5 + $0x10] sm:$0xff]
          %v518 = vld [vmem:[%s5 + $0x18] sm:$0xff]
          %v519 = vld [vmem:[%s6] sm:$0x1]
          %v521 = vperm.slane %v519, 0
          %523 = vmatpush.msra.mxu0 0.0
          %524 = vmatpush.msra.mxu0 0.0
          %525 = vmatpush.msra.mxu0 0.0
          %526 = vmatpush.msra.mxu0 0.0
          %527 = vmatpush.msra.mxu0 0.0
          %528 = vmatpush.msra.mxu0 0.0
          %529 = vmatpush.msra.mxu0 0.0
          %530 = vmatpush.msra.mxu0 0.0
          %531 = vmatpush.msra.mxu0 0.0
          %532 = vmatpush.msra.mxu0 0.0
          %533 = vmatpush.msra.mxu0 0.0
          %534 = vmatpush.msra.mxu0 0.0
          %535 = vmatpush.msra.mxu0 %v518
          %536 = vmatpush.msra.mxu0 %v517
          %537 = vmatpush.msra.mxu0 %v516
          %538 = vmatpush.msra.mxu0 %v515
          %539 = vmatmul.f32.gmra.mxu0 %v492
          %v540 = vpop.f32.mrf.mxu0
          %v541 = vadd.f32 %v521, %v540
          %542 = vdwg.mxu0
          %543 = vst.msk [vmem:[#allocation3] sm:$0xff] %vm490, %v541
          %v544 = vld [vmem:[%s7] sm:$0xff]
          %v545 = vld [vmem:[%s7 + $0x8] sm:$0xff]
          %v546 = vld [vmem:[%s7 + $0x10] sm:$0xff]
          %v547 = vld [vmem:[%s7 + $0x18] sm:$0xff]
          %v548 = vld [vmem:[%s8] sm:$0x1]
          %v550 = vperm.slane %v548, 0
          %552 = vmatpush.msra.mxu0 0.0
          %553 = vmatpush.msra.mxu0 0.0
          %554 = vmatpush.msra.mxu0 0.0
          %555 = vmatpush.msra.mxu0 0.0
          %556 = vmatpush.msra.mxu0 0.0
          %557 = vmatpush.msra.mxu0 0.0
          %558 = vmatpush.msra.mxu0 0.0
          %559 = vmatpush.msra.mxu0 0.0
          %560 = vmatpush.msra.mxu0 0.0
          %561 = vmatpush.msra.mxu0 0.0
          %562 = vmatpush.msra.mxu0 0.0
          %563 = vmatpush.msra.mxu0 0.0
          %564 = vmatpush.msra.mxu0 %v547
          %565 = vmatpush.msra.mxu0 %v546
          %566 = vmatpush.msra.mxu0 %v545
          %567 = vmatpush.msra.mxu0 %v544
          %568 = vmatmul.f32.gmra.mxu0 %v492
          %v569 = vpop.f32.mrf.mxu0
          %v570 = vadd.f32 %v550, %v569
          %571 = vdwg.mxu0
          %572 = vst.msk [vmem:[#allocation4] sm:$0xff] %vm490, %v570
          %573 = vst.msk [vmem:[#allocation5] sm:$0xff] %vm490, 0.0
          %574 = vst.msk [vmem:[#allocation6] sm:$0xff] %vm490, 0.0
          %vm575 = vcmask 0
          %576 = vst.msk [vmem:[#allocation7] sm:$0x1] %vm575, -1e+30
        $region76: #{tpu_custom_call.1} parent=63 // pred_fallthru
          _
        %v577 = vlaneseq
        %v578 = vand.u32 %v577, 127
        %v579 = vld [vmem:[%s469] sm:$0xff]
        %v580 = vld [vmem:[%s469 + $0x8] sm:$0xff]
        %581 = vset.pattern.permute.xlu0 0
        %582 = vperm.xlu0 %581, %v579
        %v583 = vpop.permute.xlu0 %582
        %584 = vset.pattern.permute.xlu0 0
        %585 = vperm.xlu0 %584, %v580
        %v586 = vpop.permute.xlu0 %585
        %vm587 = vcmp.eq.s32.totalorder %v583, %v578
        %vm588 = vcmp.eq.s32.totalorder %v586, %v578
        %v589 = vsel %vm587, 1, 0
        %v590 = vsel %vm588, 1, 0
        %v591 = vcvt.s32.f32 %v589
        %v592 = vcvt.s32.f32 %v590
        %v593 = vld [vmem:[%s475] sm:$0xff]
        %v594 = vld [vmem:[%s475 + $0x8] sm:$0xff]
        %595 = vset.pattern.permute.xlu0 0
        %596 = vperm.xlu0 %595, %v593
        %v597 = vpop.permute.xlu0 %596
        %598 = vset.pattern.permute.xlu0 0
        %599 = vperm.xlu0 %598, %v594
        %v600 = vpop.permute.xlu0 %599
        %vm601 = vcmp.eq.s32.totalorder %v597, %v578
        %vm602 = vcmp.eq.s32.totalorder %v600, %v578
        %v603 = vsel %vm601, 1, 0
        %v604 = vsel %vm602, 1, 0
        %v605 = vcvt.s32.f32 %v603
        %v606 = vcvt.s32.f32 %v604
        %v607 = vld [vmem:[#allocation2] sm:$0xff]
        %vm608 = vcmask 64512
        %v610 = vsel %vm608, %v591, 0
        %v613 = vsel %vm608, %v592, 0
        %615 = vmatpush.msra.mxu0 0.0
        %616 = vmatpush.msra.mxu0 0.0
        %617 = vmatpush.msra.mxu0 0.0
        %618 = vmatpush.msra.mxu0 0.0
        %619 = vmatpush.msra.mxu0 0.0
        %620 = vmatpush.msra.mxu0 0.0
        %621 = vmatpush.msra.mxu0 0.0
        %622 = vmatpush.msra.mxu0 0.0
        %623 = vmatpush.msra.mxu0 0.0
        %624 = vmatpush.msra.mxu0 0.0
        %625 = vmatpush.msra.mxu0 0.0
        %626 = vmatpush.msra.mxu0 0.0
        %627 = vmatpush.msra.mxu0 0.0
        %628 = vmatpush.msra.mxu0 0.0
        %629 = vmatpush.msra.mxu0 0.0
        %630 = vmatpush.msra.mxu0 %v607
        %631 = vmatmul.f32.gmra.mxu0 %v610
        %v632 = vpop.f32.mrf.mxu0
        %v633 = vadd.f32 0.0, %v632
        %634 = vmatmul.f32.gmra.mxu0 %v613
        %v635 = vpop.f32.mrf.mxu0
        %v636 = vadd.f32 0.0, %v635
        %637 = vdwg.mxu0
        %v638 = vld [vmem:[#allocation3] sm:$0xff]
        %v640 = vsel %vm608, %v605, 0
        %v643 = vsel %vm608, %v606, 0
        %645 = vmatpush.msra.mxu0 0.0
        %646 = vmatpush.msra.mxu0 0.0
        %647 = vmatpush.msra.mxu0 0.0
        %648 = vmatpush.msra.mxu0 0.0
        %649 = vmatpush.msra.mxu0 0.0
        %650 = vmatpush.msra.mxu0 0.0
        %651 = vmatpush.msra.mxu0 0.0
        %652 = vmatpush.msra.mxu0 0.0
        %653 = vmatpush.msra.mxu0 0.0
        %654 = vmatpush.msra.mxu0 0.0
        %655 = vmatpush.msra.mxu0 0.0
        %656 = vmatpush.msra.mxu0 0.0
        %657 = vmatpush.msra.mxu0 0.0
        %658 = vmatpush.msra.mxu0 0.0
        %659 = vmatpush.msra.mxu0 0.0
        %660 = vmatpush.msra.mxu0 %v638
        %661 = vmatmul.f32.gmra.mxu0 %v640
        %v662 = vpop.f32.mrf.mxu0
        %v663 = vadd.f32 0.0, %v662
        %664 = vmatmul.f32.gmra.mxu0 %v643
        %v665 = vpop.f32.mrf.mxu0
        %v666 = vadd.f32 0.0, %v665
        %667 = vdwg.mxu0
        %v668 = vld [vmem:[#allocation4] sm:$0xff]
        %669 = vmatpush.msra.mxu0 0.0
        %670 = vmatpush.msra.mxu0 0.0
        %671 = vmatpush.msra.mxu0 0.0
        %672 = vmatpush.msra.mxu0 0.0
        %673 = vmatpush.msra.mxu0 0.0
        %674 = vmatpush.msra.mxu0 0.0
        %675 = vmatpush.msra.mxu0 0.0
        %676 = vmatpush.msra.mxu0 0.0
        %677 = vmatpush.msra.mxu0 0.0
        %678 = vmatpush.msra.mxu0 0.0
        %679 = vmatpush.msra.mxu0 0.0
        %680 = vmatpush.msra.mxu0 0.0
        %681 = vmatpush.msra.mxu0 0.0
        %682 = vmatpush.msra.mxu0 0.0
        %683 = vmatpush.msra.mxu0 0.0
        %684 = vmatpush.msra.mxu0 %v668
        %685 = vmatmul.f32.gmra.mxu0 %v640
        %v686 = vpop.f32.mrf.mxu0
        %v687 = vadd.f32 0.0, %v686
        %688 = vmatmul.f32.gmra.mxu0 %v643
        %v689 = vpop.f32.mrf.mxu0
        %v690 = vadd.f32 0.0, %v689
        %691 = vdwg.mxu0
        %v692 = vlaneseq
        %v693 = vshrl.u32 %v692, 7
        %v694 = vadd.s32 %v693, 8
        %v695 = vadd.s32 %v693, 16
        %v696 = vadd.s32 %v693, 24
        %vm697 = vcmp.ge.s32.totalorder %v693, 8
        %vm698 = vcmp.ge.s32.totalorder %v694, 8
        %vm699 = vcmp.ge.s32.totalorder %v695, 8
        %vm700 = vcmp.ge.s32.totalorder %v696, 8
        %v701 = vsel %vm697, 1, 0
        %v702 = vsel %vm698, 1, 0
        %v703 = vsel %vm699, 1, 0
        %v704 = vsel %vm700, 1, 0
        %vm705 = vcmp.ge.s32.totalorder %v693, 16
        %vm706 = vcmp.ge.s32.totalorder %v694, 16
        %vm707 = vcmp.ge.s32.totalorder %v695, 16
        %vm708 = vcmp.ge.s32.totalorder %v696, 16
        %v709 = vsel %vm705, 1, 0
        %v710 = vsel %vm706, 1, 0
        %v711 = vsel %vm707, 1, 0
        %v712 = vsel %vm708, 1, 0
        %v713 = vadd.s32 %v701, %v709
        %v714 = vadd.s32 %v702, %v710
        %v715 = vadd.s32 %v703, %v711
        %v716 = vadd.s32 %v704, %v712
        %vm717 = vcmp.ge.s32.totalorder %v693, 24
        %vm718 = vcmp.ge.s32.totalorder %v694, 24
        %vm719 = vcmp.ge.s32.totalorder %v695, 24
        %vm720 = vcmp.ge.s32.totalorder %v696, 24
        %v721 = vsel %vm717, 1, 0
        %v722 = vsel %vm718, 1, 0
        %v723 = vsel %vm719, 1, 0
        %v724 = vsel %vm720, 1, 0
        %v725 = vadd.s32 %v713, %v721
        %v726 = vadd.s32 %v714, %v722
        %v727 = vadd.s32 %v715, %v723
        %v728 = vadd.s32 %v716, %v724
        %vm729 = vcmp.ge.s32.totalorder %v578, 8
        %v730 = vsel %vm729, 1, 0
        %vm731 = vcmp.ge.s32.totalorder %v578, 16
        %v732 = vsel %vm731, 1, 0
        %v733 = vadd.s32 %v730, %v732
        %vm734 = vcmp.ge.s32.totalorder %v578, 24
        %v735 = vsel %vm734, 1, 0
        %v736 = vadd.s32 %v733, %v735
        %vm737 = vcmp.eq.s32.totalorder %v725, %v736
        %vm738 = vcmp.eq.s32.totalorder %v726, %v736
        %vm739 = vcmp.eq.s32.totalorder %v727, %v736
        %vm740 = vcmp.eq.s32.totalorder %v728, %v736
        %v741 = vsel %vm737, 1, 0
        %v742 = vsel %vm738, 1, 0
        %v743 = vsel %vm739, 1, 0
        %v744 = vsel %vm740, 1, 0
        %v745 = vcvt.s32.f32 %v741
        %v746 = vcvt.s32.f32 %v742
        %v747 = vcvt.s32.f32 %v743
        %v748 = vcvt.s32.f32 %v744
        %v749 = vmul.f32 %v633, %v663
        %v750 = vmul.f32 %v636, %v666
        %vm751 = vcmask 261120
        %v753 = vsel %vm751, %v749, 0
        %v756 = vsel %vm751, %v750, 0
        %758 = vmatpush.msra.mxu0 0.0
        %759 = vmatpush.msra.mxu0 0.0
        %760 = vmatpush.msra.mxu0 0.0
        %761 = vmatpush.msra.mxu0 0.0
        %762 = vmatpush.msra.mxu0 0.0
        %763 = vmatpush.msra.mxu0 0.0
        %764 = vmatpush.msra.mxu0 0.0
        %765 = vmatpush.msra.mxu0 0.0
        %766 = vmatpush.msra.mxu0 0.0
        %767 = vmatpush.msra.mxu0 0.0
        %768 = vmatpush.msra.mxu0 0.0
        %769 = vmatpush.msra.mxu0 0.0
        %770 = vmatpush.msra.mxu0 %v748
        %771 = vmatpush.msra.mxu0 %v747
        %772 = vmatpush.msra.mxu0 %v746
        %773 = vmatpush.msra.mxu0 %v745
        %774 = vmatmul.f32.gmra.mxu0 %v753
        %v775 = vpop.f32.mrf.mxu0
        %v776 = vadd.f32 0.0, %v775
        %777 = vmatmul.f32.gmra.mxu0 %v756
        %v778 = vpop.f32.mrf.mxu0
        %v779 = vadd.f32 0.0, %v778
        %780 = vdwg.mxu0
        %v781 = vmul.f32 %v776, 0.35355338
        %v782 = vmul.f32 %v779, 0.35355338
        %v783 = vld [vmem:[#allocation7] sm:$0x1]
        %v784 = vsel %vm751, %v781, -inf
        %v785 = vsel %vm751, %v782, -inf
        %v786 = vmax.f32 %v784, %v785
        %787 = vmax.xlane.f32.xlu0 %v786
        %v788 = vpop.xlane.xlu0 %787
        %v789 = vrot.slane %v788, 4
        %v790 = vmax.f32 %v788, %v789
        %v791 = vrot.slane %v790, 2
        %v792 = vmax.f32 %v790, %v791
        %v793 = vrot.slane %v792, 1
        %v794 = vmax.f32 %v792, %v793
        %s795 = vtos %v794
        %v796 = vstv %s795
        %v797 = vmax.f32 %v783, %v796
        %v798 = vsub.f32 %v783, %v797
        %v799 = vmul.f32 %v798, 1.442695
        %v800 = vpow.pop %v799
        %v802 = vperm.slane %v797, 0
        %803 = vset.pattern.permute.xlu0 0
        %804 = vperm.xlu0 %803, %v802
        %v805 = vpop.permute.xlu0 %804
        %v807 = vsub.f32 %v781, %v805
        %v808 = vsub.f32 %v782, %v805
        %v809 = vmul.f32 %v807, 1.442695
        %v810 = vpow.pop %v809
        %v811 = vmul.f32 %v808, 1.442695
        %v812 = vpow.pop %v811
        %v813 = vld [vmem:[#allocation5] sm:$0xff]
        %v815 = vperm.slane %v800, 0
        %816 = vset.pattern.permute.xlu0 0
        %817 = vperm.xlu0 %816, %v815
        %v818 = vpop.permute.xlu0 %817
        %v820 = vmul.f32 %v818, %v813
        %v821 = vmul.f32 %v810, %v687
        %v822 = vmul.f32 %v812, %v690
        %823 = vxpose.xlu0.b32.start [1/16] %v591, 128
        %824 = vxpose.xlu0.b32.cont [2/16] %v592, 128
        %825 = vxpose.xlu0.b32.cont [3/16] 0.0, 128
        %826 = vxpose.xlu0.b32.cont [4/16] 0.0, 128
        %827 = vxpose.xlu0.b32.cont [5/16] 0.0, 128
        %828 = vxpose.xlu0.b32.cont [6/16] 0.0, 128
        %829 = vxpose.xlu0.b32.cont [7/16] 0.0, 128
        %830 = vxpose.xlu0.b32.cont [8/16] 0.0, 128
        %831 = vxpose.xlu0.b32.cont [9/16] 0.0, 128
        %832 = vxpose.xlu0.b32.cont [10/16] 0.0, 128
        %833 = vxpose.xlu0.b32.cont [11/16] 0.0, 128
        %834 = vxpose.xlu0.b32.cont [12/16] 0.0, 128
        %835 = vxpose.xlu0.b32.cont [13/16] 0.0, 128
        %836 = vxpose.xlu0.b32.cont [14/16] 0.0, 128
        %837 = vxpose.xlu0.b32.cont [15/16] 0.0, 128
        %838 = vxpose.xlu0.b32.end [16/16] 0.0, 128
        %v839 = vpop.trf.xlu0
        %v840 = vpop.trf.xlu0
        %v841 = vpop.trf.xlu0
        %v842 = vpop.trf.xlu0
        %v843 = vpop.trf.xlu0
        %v844 = vpop.trf.xlu0
        %v845 = vpop.trf.xlu0
        %v846 = vpop.trf.xlu0
        %v847 = vpop.trf.xlu0
        %v848 = vpop.trf.xlu0
        %v849 = vpop.trf.xlu0
        %v850 = vpop.trf.xlu0
        %v851 = vpop.trf.xlu0
        %v852 = vpop.trf.xlu0
        %v853 = vpop.trf.xlu0
        %v854 = vpop.trf.xlu0
        %vm855 = vcmask 130048
        %v857 = vsel %vm855, %v839, 0
        %859 = vmatpush.msra.mxu0 0.0
        %860 = vmatpush.msra.mxu0 0.0
        %861 = vmatpush.msra.mxu0 0.0
        %862 = vmatpush.msra.mxu0 0.0
        %863 = vmatpush.msra.mxu0 0.0
        %864 = vmatpush.msra.mxu0 0.0
        %865 = vmatpush.msra.mxu0 0.0
        %866 = vmatpush.msra.mxu0 0.0
        %867 = vmatpush.msra.mxu0 0.0
        %868 = vmatpush.msra.mxu0 0.0
        %869 = vmatpush.msra.mxu0 0.0
        %870 = vmatpush.msra.mxu0 0.0
        %871 = vmatpush.msra.mxu0 0.0
        %872 = vmatpush.msra.mxu0 0.0
        %873 = vmatpush.msra.mxu0 %v822
        %874 = vmatpush.msra.mxu0 %v821
        %875 = vmatmul.f32.gmra.mxu0 %v857
        %v876 = vpop.f32.mrf.mxu0
        %v877 = vadd.f32 0.0, %v876
        %878 = vdwg.mxu0
        %v879 = vadd.f32 %v820, %v877
        %880 = vst.msk [vmem:[#allocation5] sm:$0xff] %vm751, %v879
        %v881 = vld [vmem:[#allocation6] sm:$0xff]
        %v882 = vmul.f32 %v818, %v881
        %883 = vmatpush.msra.mxu0 0.0
        %884 = vmatpush.msra.mxu0 0.0
        %885 = vmatpush.msra.mxu0 0.0
        %886 = vmatpush.msra.mxu0 0.0
        %887 = vmatpush.msra.mxu0 0.0
        %888 = vmatpush.msra.mxu0 0.0
        %889 = vmatpush.msra.mxu0 0.0
        %890 = vmatpush.msra.mxu0 0.0
        %891 = vmatpush.msra.mxu0 0.0
        %892 = vmatpush.msra.mxu0 0.0
        %893 = vmatpush.msra.mxu0 0.0
        %894 = vmatpush.msra.mxu0 0.0
        %895 = vmatpush.msra.mxu0 0.0
        %896 = vmatpush.msra.mxu0 0.0
        %897 = vmatpush.msra.mxu0 %v812
        %898 = vmatpush.msra.mxu0 %v810
        %899 = vmatmul.f32.gmra.mxu0 %v857
        %v900 = vpop.f32.mrf.mxu0
        %v901 = vadd.f32 0.0, %v900
        %902 = vdwg.mxu0
        %v903 = vadd.f32 %v882, %v901
        %904 = vst.msk [vmem:[#allocation6] sm:$0xff] %vm751, %v903
        %vm905 = vcmask 0
        %906 = vst.msk [vmem:[#allocation7] sm:$0x1] %vm905, %v797
        %p907 = scmp.eq.s32.totalorder %s34, 2
        // Predicated region
        $region77: #{tpu_custom_call.1} parent=63 // pred_check
          %p908 = pneg %p907
        $region78: #{tpu_custom_call.1} parent=63 // pred_check_branch
          %910 = sbr.rel (%p908) target = $region80
        $region79: #{tpu_custom_call.1} parent=63 // pred_region
          %v911 = vld [vmem:[#allocation5] sm:$0xff]
          %v912 = vld [vmem:[#allocation6] sm:$0xff]
          %v913 = vrcp.pop %v912
          %v914 = vmul.f32 %v912, %v913
          %v915 = vsub.f32 1.0, %v914
          %v916 = vmul.f32 %v913, %v915
          %v917 = vadd.f32 %v913, %v916
          %vm918 = vweird.f32 %v912
          %vm919 = vweird.f32 %v913
          %vm920 = vmor %vm918, %vm919
          %v921 = vsel %vm920, %v913, %v917
          %v922 = vand.u32 2147483647, %v912
          %vm923 = vcmp.eq.f32.partialorder %v922, 8.507059e+37
          %v924 = vand.u32 %v912, 2147483648
          %v925 = vor.u32 1.1754944e-38, %v924
          %v926 = vsel %vm923, %v925, %v921
          %v927 = vmul.f32 %v911, %v926
          %v928 = vld [vmem:[#allocation11] sm:$0xff]
          %v929 = vld [vmem:[#allocation11 + $0x8] sm:$0xff]
          %v930 = vld [vmem:[#allocation11 + $0x10] sm:$0xff]
          %v931 = vld [vmem:[#allocation11 + $0x18] sm:$0xff]
          %v932 = vld [vmem:[%s10] sm:$0x1]
          %v934 = vperm.slane %v932, 0
          %v937 = vsel %vm751, %v927, 0
          %939 = vmatpush.msra.mxu0 0.0
          %940 = vmatpush.msra.mxu0 0.0
          %941 = vmatpush.msra.mxu0 0.0
          %942 = vmatpush.msra.mxu0 0.0
          %943 = vmatpush.msra.mxu0 0.0
          %944 = vmatpush.msra.mxu0 0.0
          %945 = vmatpush.msra.mxu0 0.0
          %946 = vmatpush.msra.mxu0 0.0
          %947 = vmatpush.msra.mxu0 0.0
          %948 = vmatpush.msra.mxu0 0.0
          %949 = vmatpush.msra.mxu0 0.0
          %950 = vmatpush.msra.mxu0 0.0
          %951 = vmatpush.msra.mxu0 %v931
          %952 = vmatpush.msra.mxu0 %v930
          %953 = vmatpush.msra.mxu0 %v929
          %954 = vmatpush.msra.mxu0 %v928
          %955 = vmatmul.f32.gmra.mxu0 %v937
          %v956 = vpop.f32.mrf.mxu0
          %v957 = vadd.f32 %v934, %v956
          %958 = vdwg.mxu0
          %959 = vst.msk [vmem:[%s464] sm:$0xff] %vm751, %v957
        $region80: #{tpu_custom_call.1} parent=63 // pred_fallthru
          _
        %s960 = sand.u32 %s295, 1
        %s961 = scalar_lea.sflag [#allocation10], %s960
        %s962 = sand.u32 %s295, 1
        %s963 = smul.addr %s962, 8
        %s964 = scalar_lea.vmem [#allocation13], %s963
        // Predicated region
        $region81: #{tpu_custom_call.1} parent=63 // pred_check
          %p965 = pneg %p305
        $region82: #{tpu_custom_call.1} parent=63 // pred_check_branch
          %967 = sbr.rel (%p965) target = $region84
        $region83: #{tpu_custom_call.1} parent=63 // pred_region
          %969 = vsyncadd %s961, 0
          %s970 = smul.addr %s33, 8
          %s971 = scalar_lea.hbm %s11, %s970
          %s973 = sshll.u32 %s964, 4
          %s974 = int_to_ptr.vmem [resolvable:$true] %s973
          %s975 = sshll.u32 %s971, 4
          %s976 = int_to_ptr.hbm [resolvable:$true] %s975
          %978 = dma.vmem_to_hbm [thread:$0]  %s974, 128, %s976, %s961
        $region84: #{tpu_custom_call.1} parent=63 // pred_fallthru
          _
      $region64: #{tpu_custom_call.1} parent=5 // pred_fallthru
        _
      %p979 = scmp.le.s32.totalorder 2, %s24
      // Predicated region
      $region85: #{tpu_custom_call.1} parent=5 // pred_check
        %p980 = pneg %p979
      $region86: #{tpu_custom_call.1} parent=5 // pred_check_branch
        %982 = sbr.rel (%p980) target = $region88
      $region87: #{tpu_custom_call.1} parent=5 // pred_region
        %s983 = ssub.s32 %s24, 2
        // Predicated region
        $region89: #{tpu_custom_call.1} parent=87 // pred_check
          %p984 = pneg %p311
        $region90: #{tpu_custom_call.1} parent=87 // pred_check_branch
          %986 = sbr.rel (%p984) target = $region92
        $region91: #{tpu_custom_call.1} parent=87 // pred_region
          %s987 = sand.u32 %s296, 1
          %s988 = scalar_lea.sflag [#allocation10], %s987
          %s989 = sand.u32 %s296, 1
          %s990 = smul.addr %s989, 8
          %s991 = scalar_lea.vmem [#allocation13], %s990
          %993 = dma.done %s988, 128
        $region92: #{tpu_custom_call.1} parent=87 // pred_fallthru
          _
      $region88: #{tpu_custom_call.1} parent=5 // pred_fallthru
        _
    $region6: #{tpu_custom_call.1} parent=1 // loop_footer
      %s28 = sadd.s32 1, %s24
    $region7: #{tpu_custom_call.1} parent=1 // loop_footer_branch
      %23 = sbr.rel target = $region3
    $region8: #{tpu_custom_call.1} parent=1 // loop_exit
      _
    %994 = vsyncpa [#allocation9], 1
    %s995 = scalar_lea.sflag [#allocation9], 1
    %996 = vsyncpa %s995, 1
    %997 = vsyncpa [#allocation12], 1
    %998 = vsyncpa [#allocation10], 1
    %s999 = scalar_lea.sflag [#allocation10], 1
    %1000 = vsyncpa %s999, 1

</llo_original>
